<compile_context>
chip_gen: v6e
topology: v6e:2x2x1
jax: 0.10.0
libtpu: 0.0.40
codegen_flags: <defaults>
</compile_context>

<pallas_src>
import functools

import jax
import jax.numpy as jnp
from jax import lax
from jax.experimental import pallas as pl
from jax.experimental.pallas import tpu as pltpu


# ----------------------------------------------------------------------------
# forward(z, edge_index): per-edge inner product + sigmoid
# ----------------------------------------------------------------------------
def _decoder_fwd_kernel(idx_ref, zt_ref, out_ref, *, apply_sigmoid, nc):
    # idx_ref: (2, TE) int32      -- edge endpoints for this tile of edges
    # zt_ref:  (D, N_pad) f32     -- full (transposed) embedding table in VMEM
    # out_ref: (1, TE) f32        -- per-edge scores (lane-dense)
    d, n_pad = zt_ref.shape
    te = idx_ref.shape[1]
    n_chunks = n_pad // nc

    idx = idx_ref[...]                                        # (2, TE) int32
    # Fused src/dst column indices: (1, 2*TE).
    cols = jnp.concatenate([idx[0:1, :], idx[1:2, :]], axis=1)

    def chunk_gather(c0):
        # One-hot for this N-chunk only: bounded live intermediate
        # (NC, 2*TE) instead of (N, 2*TE).
        row_iota = lax.broadcasted_iota(jnp.int32, (nc, 2 * te), 0) + c0
        oh = (row_iota == cols).astype(zt_ref.dtype)          # (NC, 2*TE)
        zt_chunk = zt_ref[:, pl.ds(c0, nc)]                   # (D, NC)
        # Standard contraction (dim 1 of LHS vs dim 0 of RHS) -> MXU, output
        # lane dim = 2*TE (full result width), no transposes.
        return lax.dot_general(
            zt_chunk, oh,
            dimension_numbers=(((1,), (0,)), ((), ())),
            preferred_element_type=jnp.float32)               # (D, 2*TE)

    if n_chunks == 1:
        gathered = chunk_gather(0)
    else:
        def body(c, acc):
            c0 = pl.multiple_of(c * nc, nc)
            return acc + chunk_gather(c0)
        gathered = lax.fori_loop(
            0, n_chunks, body,
            jnp.zeros((d, 2 * te), jnp.float32),
            unroll=(n_chunks <= 8))

    src = gathered[:, :te]                                    # (D, TE)
    dst = gathered[:, te:]                                    # (D, TE)
    x = jnp.sum(src * dst, axis=0, keepdims=True)             # (1, TE)
    if apply_sigmoid:
        x = jax.nn.sigmoid(x)
    out_ref[...] = x.astype(out_ref.dtype)


def inner_product_decoder_forward(z, edge_index, sigmoid=True, te=None, nc=256):
    """Equivalent of InnerProductDecoder.forward(z, edge_index, sigmoid)."""
    n, d = z.shape
    e = edge_index.shape[1]

    # Contraction chunk size: multiple of 128 (lane dim of the zT slice).
    nc = max(128, min(nc, pl.cdiv(n, 128) * 128))
    n_pad = pl.cdiv(n, nc) * nc

    # Adaptive lane-dense edge-tile width: wider tiles amortize per-grid-step
    # overhead, but the one-hot chunk scales as NC*2*TE, so cap by N.
    if te is None:
        te = 1024 if n_pad <= 1024 else (512 if n_pad <= 4096 else 256)
    te = max(128, min(te, pl.cdiv(e, 128) * 128))
    e_pad = pl.cdiv(e, te) * te

    # One-time XLA transpose + zero-pad of z -> (D, N_pad).  Padded columns
    # are zero and never matched by the one-hot (edge ids < N), so they are
    # inert in the accumulation.
    zt = z.T
    if n_pad != n:
        zt = jnp.pad(zt, ((0, 0), (0, n_pad - n)))

    idx = edge_index.astype(jnp.int32)
    if e_pad != e:
        # Padded edges point at row 0 (a valid row); their scores are computed
        # but sliced off below -- no OOB reads, no NaNs.
        idx = jnp.concatenate(
            [idx, jnp.zeros((2, e_pad - e), dtype=jnp.int32)], axis=1)

    # VMEM budget (per TensorCore): single-buffered zT + double-buffered
    # idx/out tiles + one-hot chunk + gather accumulator, with headroom.
    vmem_est = (
        d * n_pad * 4                     # resident zT (single-buffered)
        + 2 * (2 * te * 4 + te * 4)       # idx + out tiles (double-buffered)
        + nc * 2 * te * 4                 # one-hot chunk intermediate
        + d * 2 * te * 4                  # gathered accumulator
    )
    vmem_limit = int(min(64 << 20, max(32 << 20, int(1.5 * vmem_est) + (4 << 20))))

    # TODO(synk): for very large N (zT alone near the per-TC VMEM budget, e.g.
    # N*D*4 approaching ~48 MiB on v7x), switch to a DMA row-gather path
    # (z kept in HBM via memory_space=pl.ANY + scalar-prefetched edge ids);
    # the one-hot matmul cost scales with N rather than with useful work.

    def _call(single_buffer_z):
        if single_buffer_z:
            # Constant index_map: block never changes across edge tiles, so
            # one buffer suffices (halves zT's VMEM cost vs default 2 bufs).
            zt_spec = pl.BlockSpec((d, n_pad), lambda i: (0, 0),
                                   pipeline_mode=pl.Buffered(1))
        else:
            zt_spec = pl.BlockSpec((d, n_pad), lambda i: (0, 0))
        return pl.pallas_call(
            functools.partial(_decoder_fwd_kernel,
                              apply_sigmoid=sigmoid, nc=nc),
            out_shape=jax.ShapeDtypeStruct((1, e_pad), jnp.float32),
            grid_spec=pl.GridSpec(
                grid=(e_pad // te,),
                in_specs=[
                    pl.BlockSpec((2, te), lambda i: (0, i)),   # edge-index tile
                    zt_spec,                                   # resident zT
                ],
                out_specs=pl.BlockSpec((1, te), lambda i: (0, i)),
            ),
            compiler_params=pltpu.CompilerParams(
                dimension_semantics=("parallel",),
                vmem_limit_bytes=vmem_limit),
        )(idx, zt)

    try:
        out = _call(True)
    except Exception:
        # Older Pallas without pipeline_mode support on pallas_call BlockSpecs:
        # fall back to default double-buffering (correctness unchanged).
        out = _call(False)
    return out.reshape(e_pad)[:e]


# ----------------------------------------------------------------------------
# forward_all(z): dense adjacency sigmoid(z @ z.T), tiled
# ----------------------------------------------------------------------------
def _decoder_all_kernel(zi_ref, zj_ref, out_ref, *, apply_sigmoid, use_bf16):
    # zi_ref: (TM, D), zj_ref: (TN, D), out_ref: (TM, TN)
    zi = zi_ref[...]
    zj = zj_ref[...]
    if use_bf16:
        # Optional MXU-peak path (breaks exact f32 parity; gated by flag).
        zi = zi.astype(jnp.bfloat16)
        zj = zj.astype(jnp.bfloat16)
    # Contract the feature dim of BOTH operands (rhs consumed transposed by
    # the MXU) -- no explicit .T, no XLU transpose copy per tile.
    adj = lax.dot_general(
        zi, zj,
        dimension_numbers=(((1,), (1,)), ((), ())),
        preferred_element_type=jnp.float32)
    if apply_sigmoid:
        adj = jax.nn.sigmoid(adj)
    out_ref[...] = adj.astype(out_ref.dtype)


def inner_product_decoder_forward_all(z, sigmoid=True, tm=512, tn=512,
                                      use_bf16_matmul=False):
    """Equivalent of InnerProductDecoder.forward_all(z, sigmoid)."""
    n, d = z.shape
    tm = min(tm, n)
    tn = min(tn, n)
    grid = (pl.cdiv(n, tm), pl.cdiv(n, tn))

    # Double-buffered zi/zj/out tiles + headroom; clamp to the v7x per-TC cap.
    vmem_est = 2 * (tm * d + tn * d + tm * tn) * 4
    vmem_limit = int(min(64 << 20, max(32 << 20, 2 * vmem_est + (4 << 20))))

    return pl.pallas_call(
        functools.partial(_decoder_all_kernel, apply_sigmoid=sigmoid,
                          use_bf16=use_bf16_matmul),
        out_shape=jax.ShapeDtypeStruct((n, n), jnp.float32),
        grid_spec=pl.GridSpec(
            grid=grid,
            in_specs=[
                pl.BlockSpec((tm, d), lambda i, j: (i, 0)),  # row tile
                pl.BlockSpec((tn, d), lambda i, j: (j, 0)),  # col tile
            ],
            out_specs=pl.BlockSpec((tm, tn), lambda i, j: (i, j)),
        ),
        compiler_params=pltpu.CompilerParams(
            dimension_semantics=("parallel", "parallel"),
            vmem_limit_bytes=vmem_limit),
    )(z, z)


# ----------------------------------------------------------------------------
if __name__ == "__main__":
    key = jax.random.PRNGKey(0)

    def run_case(n, d, e, subkey):
        kz, ksrc, kdst = jax.random.split(subkey, 3)
        z = jax.random.normal(kz, (n, d), dtype=jnp.float32)
        edge_index = jnp.stack([
            jax.random.randint(ksrc, (e,), 0, n, dtype=jnp.int32),
            jax.random.randint(kdst, (e,), 0, n, dtype=jnp.int32),
        ], axis=0)                                            # (2, E)

        # Pallas kernels
        out_edges = inner_product_decoder_forward(z, edge_index, sigmoid=True)
        out_adj = inner_product_decoder_forward_all(z, sigmoid=True)
        jax.block_until_ready((out_edges, out_adj))

        # Pure-JAX references (mirror of the PyTorch forward passes)
        ref_edges = jax.nn.sigmoid(
            jnp.sum(z[edge_index[0]] * z[edge_index[1]], axis=1))
        ref_adj = jax.nn.sigmoid(z @ z.T)

        assert out_edges.shape == (e,) and out_edges.dtype == jnp.float32
        assert out_adj.shape == (n, n) and out_adj.dtype == jnp.float32
        assert jnp.allclose(out_edges, ref_edges, atol=2e-5, rtol=2e-5)
        assert jnp.allclose(out_adj, ref_adj, atol=2e-5, rtol=2e-5)

    k1, k2 = jax.random.split(key)
    # Small: single N-chunk, single edge tile, single forward_all tile.
    run_case(64, 32, 200, k1)
    # Larger: chunked N loop (3 chunks), 2 edge tiles, 2x2 forward_all grid
    # with padded boundary blocks.
    run_case(640, 48, 1500, k2)

    print("KERNEL_OK")
</pallas_src>

<mosaic_0001>
module attributes {stable_mosaic.version = 11 : i64} {
  func.func @_decoder_fwd_kernel(%arg0: i32, %arg1: memref<2x256xi32, #tpu.memory_space<vmem>>, %arg2: memref<32x128xf32, #tpu.memory_space<vmem>>, %arg3: memref<1x256xf32, #tpu.memory_space<vmem>>) attributes {dimension_semantics = [#tpu.dimension_semantics<parallel>], iteration_bounds = array<i64: 1>, scalar_prefetch = 0 : i64, scratch_operands = 0 : i64, tpu.core_type = #tpu.core_type<tc>, window_params = [{transform_indices = @transform_0, window_bounds = array<i64: 2, 256>}, {pipeline_mode = #tpu.pipeline_mode<synchronous>, transform_indices = @transform_1, window_bounds = array<i64: 32, 128>}, {transform_indices = @transform_2, window_bounds = array<i64: 1, 256>}]} {
    %c0 = arith.constant 0 : index
    %c0_0 = arith.constant 0 : index
    %0 = vector.load %arg1[%c0, %c0_0] : memref<2x256xi32, #tpu.memory_space<vmem>>, vector<2x256xi32>
    %1 = vector.extract_strided_slice %0 {offsets = [0, 0], sizes = [1, 256], strides = [1, 1]} : vector<2x256xi32> to vector<1x256xi32>
    %2 = vector.extract_strided_slice %0 {offsets = [1, 0], sizes = [1, 256], strides = [1, 1]} : vector<2x256xi32> to vector<1x256xi32>
    %3 = tpu.concatenate %1, %2 in 1 : vector<1x256xi32>, vector<1x256xi32> -> vector<1x512xi32>
    %4 = tpu.iota {dimensions = array<i32: 0>} : vector<128x512xi32>
    %c0_i32 = arith.constant 0 : i32
    %5 = vector.broadcast %c0_i32 : i32 to vector<128x512xi32>
    %6 = arith.addi %4, %5 : vector<128x512xi32>
    %7 = vector.broadcast %3 : vector<1x512xi32> to vector<128x512xi32>
    %8 = arith.cmpi eq, %6, %7 : vector<128x512xi32>
    %9 = arith.extui %8 : vector<128x512xi1> to vector<128x512xi32>
    %10 = arith.sitofp %9 : vector<128x512xi32> to vector<128x512xf32>
    %c0_1 = arith.constant 0 : index
    %c0_2 = arith.constant 0 : index
    %11 = vector.load %arg2[%c0_1, %c0_2] : memref<32x128xf32, #tpu.memory_space<vmem>>, vector<32x128xf32>
    %cst = arith.constant dense<0.000000e+00> : vector<32x512xf32>
    %12 = tpu.matmul %11, %10, %cst {dimension_numbers = #tpu.dot_dimension_numbers<[1], [0], [0], [1], [0, 0, 1, 1], [], []>} : vector<32x128xf32>, vector<128x512xf32>, vector<32x512xf32> -> vector<32x512xf32>
    %13 = vector.extract_strided_slice %12 {offsets = [0, 0], sizes = [32, 256], strides = [1, 1]} : vector<32x512xf32> to vector<32x256xf32>
    %14 = vector.extract_strided_slice %12 {offsets = [0, 256], sizes = [32, 256], strides = [1, 1]} : vector<32x512xf32> to vector<32x256xf32>
    %15 = arith.mulf %13, %14 : vector<32x256xf32>
    %cst_3 = arith.constant dense<0.000000e+00> : vector<256xf32>
    %16 = vector.multi_reduction <add>, %15, %cst_3 [0] : vector<32x256xf32> to vector<256xf32>
    %17 = vector.shape_cast %16 : vector<256xf32> to vector<1x256xf32>
    %18 = arith.negf %17 : vector<1x256xf32>
    %19 = math.exp %18 : vector<1x256xf32>
    %cst_4 = arith.constant 1.000000e+00 : f32
    %20 = vector.broadcast %cst_4 : f32 to vector<1x256xf32>
    %21 = arith.addf %20, %19 : vector<1x256xf32>
    %22 = arith.divf %20, %21 : vector<1x256xf32>
    %c0_5 = arith.constant 0 : index
    %c0_6 = arith.constant 0 : index
    %23 = vector.load %arg3[%c0_5, %c0_6] : memref<1x256xf32, #tpu.memory_space<vmem>>, vector<1x256xf32>
    tpu.vector_store %arg3[%c0_5, %c0_6], %22 {strides = array<i32>} : memref<1x256xf32, #tpu.memory_space<vmem>>, vector<1x256xf32>,
    return
  }
  func.func @transform_0(%arg0: i32) -> (i32, i32) {
    %c0_i32 = arith.constant 0 : i32
    %c0_i32_0 = arith.constant 0 : i32
    return %c0_i32, %arg0 : i32, i32
  }
  func.func @transform_1(%arg0: i32) -> (i32, i32) {
    %c0_i32 = arith.constant 0 : i32
    %c0_i32_0 = arith.constant 0 : i32
    %c0_i32_1 = arith.constant 0 : i32
    return %c0_i32, %c0_i32_0 : i32, i32
  }
  func.func @transform_2(%arg0: i32) -> (i32, i32) {
    %c0_i32 = arith.constant 0 : i32
    %c0_i32_0 = arith.constant 0 : i32
    return %c0_i32, %arg0 : i32, i32
  }
}

module attributes {stable_mosaic.version = 11 : i64} {
  func.func @_decoder_fwd_kernel(%arg0: i32, %arg1: memref<2x256xi32, #tpu.memory_space<vmem>>, %arg2: memref<32x128xf32, #tpu.memory_space<vmem>>, %arg3: memref<1x256xf32, #tpu.memory_space<vmem>>) attributes {dimension_semantics = [#tpu.dimension_semantics<parallel>], iteration_bounds = array<i64: 1>, scalar_prefetch = 0 : i64, scratch_operands = 0 : i64, tpu.core_type = #tpu.core_type<tc>, window_params = [{transform_indices = @transform_0, window_bounds = array<i64: 2, 256>}, {pipeline_mode = #tpu.pipeline_mode<synchronous>, transform_indices = @transform_1, window_bounds = array<i64: 32, 128>}, {transform_indices = @transform_2, window_bounds = array<i64: 1, 256>}]} {
    %c0 = arith.constant 0 : index
    %c0_0 = arith.constant 0 : index
    %0 = vector.load %arg1[%c0, %c0_0] : memref<2x256xi32, #tpu.memory_space<vmem>>, vector<2x256xi32>
    %1 = vector.extract_strided_slice %0 {offsets = [0, 0], sizes = [1, 256], strides = [1, 1]} : vector<2x256xi32> to vector<1x256xi32>
    %2 = vector.extract_strided_slice %0 {offsets = [1, 0], sizes = [1, 256], strides = [1, 1]} : vector<2x256xi32> to vector<1x256xi32>
    %3 = tpu.concatenate %1, %2 in 1 : vector<1x256xi32>, vector<1x256xi32> -> vector<1x512xi32>
    %4 = tpu.iota {dimensions = array<i32: 0>} : vector<128x512xi32>
    %c0_i32 = arith.constant 0 : i32
    %5 = vector.broadcast %c0_i32 : i32 to vector<128x512xi32>
    %6 = arith.addi %4, %5 : vector<128x512xi32>
    %7 = vector.broadcast %3 : vector<1x512xi32> to vector<128x512xi32>
    %8 = arith.cmpi eq, %6, %7 : vector<128x512xi32>
    %9 = arith.extui %8 : vector<128x512xi1> to vector<128x512xi32>
    %10 = arith.sitofp %9 : vector<128x512xi32> to vector<128x512xf32>
    %c0_1 = arith.constant 0 : index
    %c0_2 = arith.constant 0 : index
    %11 = vector.load %arg2[%c0_1, %c0_2] : memref<32x128xf32, #tpu.memory_space<vmem>>, vector<32x128xf32>
    %cst = arith.constant dense<0.000000e+00> : vector<32x512xf32>
    %12 = tpu.matmul %11, %10, %cst {dimension_numbers = #tpu.dot_dimension_numbers<[1], [0], [0], [1], [0, 0, 1, 1], [], []>} : vector<32x128xf32>, vector<128x512xf32>, vector<32x512xf32> -> vector<32x512xf32>
    %13 = vector.extract_strided_slice %12 {offsets = [0, 0], sizes = [32, 256], strides = [1, 1]} : vector<32x512xf32> to vector<32x256xf32>
    %14 = vector.extract_strided_slice %12 {offsets = [0, 256], sizes = [32, 256], strides = [1, 1]} : vector<32x512xf32> to vector<32x256xf32>
    %15 = arith.mulf %13, %14 : vector<32x256xf32>
    %cst_3 = arith.constant dense<0.000000e+00> : vector<256xf32>
    %16 = vector.multi_reduction <add>, %15, %cst_3 [0] : vector<32x256xf32> to vector<256xf32>
    %17 = vector.shape_cast %16 : vector<256xf32> to vector<1x256xf32>
    %18 = arith.negf %17 : vector<1x256xf32>
    %19 = math.exp %18 : vector<1x256xf32>
    %cst_4 = arith.constant 1.000000e+00 : f32
    %20 = vector.broadcast %cst_4 : f32 to vector<1x256xf32>
    %21 = arith.addf %20, %19 : vector<1x256xf32>
    %22 = arith.divf %20, %21 : vector<1x256xf32>
    %c0_5 = arith.constant 0 : index
    %c0_6 = arith.constant 0 : index
    %23 = vector.load %arg3[%c0_5, %c0_6] : memref<1x256xf32, #tpu.memory_space<vmem>>, vector<1x256xf32>
    tpu.vector_store %arg3[%c0_5, %c0_6], %22 {strides = array<i32>} : memref<1x256xf32, #tpu.memory_space<vmem>>, vector<1x256xf32>,
    return
  }
  func.func @transform_0(%arg0: i32) -> (i32, i32) {
    %c0_i32 = arith.constant 0 : i32
    %c0_i32_0 = arith.constant 0 : i32
    return %c0_i32, %arg0 : i32, i32
  }
  func.func @transform_1(%arg0: i32) -> (i32, i32) {
    %c0_i32 = arith.constant 0 : i32
    %c0_i32_0 = arith.constant 0 : i32
    %c0_i32_1 = arith.constant 0 : i32
    return %c0_i32, %c0_i32_0 : i32, i32
  }
  func.func @transform_2(%arg0: i32) -> (i32, i32) {
    %c0_i32 = arith.constant 0 : i32
    %c0_i32_0 = arith.constant 0 : i32
    return %c0_i32, %arg0 : i32, i32
  }
}

</mosaic_0001>

<llo_original>
// kernel: tpu_custom_call.1
$region0: #{tpu_custom_call.1}
  #allocation0 [shape = 'u32[]', space=smem, size = 0x4, offset = 0x4, fixed_abs, tag = 'smem constant byte address 0x4 - core index']
  #allocation1 [shape = 'u32[144,128]{1,0:T(1,128)}', space=vmem, size = 0x12000, scoped, tag = 'internal scratch']
  %s0 = inlined_call_operand.hbm [shape: s32[2,256], index: 0, kind: input, shape index: {}]
  %s1 = inlined_call_operand.hbm [shape: f32[32,128], index: 1, kind: input, shape index: {}]
  %s2 = inlined_call_operand.hbm [shape: f32[1,256], index: 2, kind: output, shape index: {}]
  %s3 = sld [smem:[#allocation0]]
  $region26: #{tpu_custom_call.1} parent=0
    _
  %s5 = ssub.s32 1, %s3
  %s6 = scalar_select 0, %s5, %s3
  $region1: #{tpu_custom_call.1} parent=0
    #allocation2 [shape = 'u8[2048]{0}', space=vmem, size = 0x800, scoped, tag = 'input window, operand 0, single buffered']
    #allocation3 [shape = 's32[1]{0}', space=sflag, size = 0x4, scoped, tag = 'scoped memory for tpu_custom_call.1']
    #allocation4 [shape = 's32[1]{0}', space=sflag, size = 0x4, scoped, tag = 'scoped memory for tpu_custom_call.1']
    #allocation5 [shape = 'u8[16384]{0}', space=vmem, size = 0x4000, scoped, tag = 'input window, operand 1, single buffered']
    #allocation6 [shape = 's32[1]{0}', space=sflag, size = 0x4, scoped, tag = 'scoped memory for tpu_custom_call.1']
    #allocation7 [shape = 'u8[1024]{0}', space=vmem, size = 0x400, scoped, tag = 'output window, operand 0, single buffered']
    %7 = vsyncpa [#allocation3], 0
    %8 = vsyncpa [#allocation6], 0
    %9 = vsyncpa [#allocation4], 0
    // Predicated region
    $region2: #{tpu_custom_call.1} parent=1 // pred_check
      _
    $region3: #{tpu_custom_call.1} parent=1 // pred_check_branch
      %11 = sbr.rel (0) target = $region5
    $region4: #{tpu_custom_call.1} parent=1 // pred_region
      %s13 = ssub.s32 64, 64
      %14 = vsyncadd [#allocation3], %s13
      %s16 = sshll.u32 [#allocation2], 4
      %s17 = int_to_ptr.vmem [resolvable:$true] %s16
      %19 = dma.hbm_to_vmem [thread:$0]  %s0, 64, %s17, [#allocation3]
    $region5: #{tpu_custom_call.1} parent=1 // pred_fallthru
      _
    // Predicated region
    $region6: #{tpu_custom_call.1} parent=1 // pred_check
      _
    $region7: #{tpu_custom_call.1} parent=1 // pred_check_branch
      %21 = sbr.rel (0) target = $region9
    $region8: #{tpu_custom_call.1} parent=1 // pred_region
      %s23 = ssub.s32 512, 512
      %24 = vsyncadd [#allocation6], %s23
      %s25 = sshll.u32 [#allocation5], 4
      %s26 = int_to_ptr.vmem [resolvable:$true] %s25
      %31 = dma.hbm_to_vmem [thread:$0]  %s1, 512, %s26, [#allocation6], 128, 128, 8
    $region9: #{tpu_custom_call.1} parent=1 // pred_fallthru
      _
    // Predicated region
    $region10: #{tpu_custom_call.1} parent=1 // pred_check
      _
    $region11: #{tpu_custom_call.1} parent=1 // pred_check_branch
      %33 = sbr.rel (0) target = $region13
    $region12: #{tpu_custom_call.1} parent=1 // pred_region
      %34 = dma.done [#allocation3], 64
    $region13: #{tpu_custom_call.1} parent=1 // pred_fallthru
      _
    // Predicated region
    $region14: #{tpu_custom_call.1} parent=1 // pred_check
      _
    $region15: #{tpu_custom_call.1} parent=1 // pred_check_branch
      %36 = sbr.rel (0) target = $region17
    $region16: #{tpu_custom_call.1} parent=1 // pred_region
      %37 = dma.done [#allocation6], 512
    $region17: #{tpu_custom_call.1} parent=1 // pred_fallthru
      _
    %v38 = vld [vmem:[#allocation2] sm:$0xf]
    %v39 = vlaneseq
    %v40 = vshrl.u32 %v39, 7
    %v41 = vsub.s32 0, %v40
    %v42 = vrot.slane %v38, %v41
    %v43 = vlaneseq
    %v44 = vshrl.u32 %v43, 7
    %v45 = vsub.s32 2, %v44
    %v46 = vrot.slane %v38, %v45
    %v47 = vlaneseq
    %v48 = vshrl.u32 %v47, 7
    %v49 = vsub.s32 1, %v48
    %v50 = vrot.slane %v38, %v49
    %v51 = vlaneseq
    %v52 = vshrl.u32 %v51, 7
    %v53 = vsub.s32 3, %v52
    %v54 = vrot.slane %v38, %v53
    %v55 = vlaneseq
    %v56 = vshrl.u32 %v55, 7
    %v57 = vadd.s32 %v56, 8
    %v58 = vadd.s32 %v56, 16
    %v59 = vadd.s32 %v56, 24
    %v60 = vadd.s32 %v56, 32
    %v61 = vadd.s32 %v56, 40
    %v62 = vadd.s32 %v56, 48
    %v63 = vadd.s32 %v56, 56
    %v64 = vadd.s32 %v56, 64
    %v65 = vadd.s32 %v56, 72
    %v66 = vadd.s32 %v56, 80
    %v67 = vadd.s32 %v56, 88
    %v68 = vadd.s32 %v56, 96
    %v69 = vadd.s32 %v56, 104
    %v70 = vadd.s32 %v56, 112
    %v71 = vadd.s32 %v56, 120
    %v72 = vlaneseq
    %v73 = vshrl.u32 %v72, 7
    %v74 = vsub.s32 0, %v73
    %v75 = vrot.slane %v42, %v74
    %v76 = vlaneseq
    %v77 = vshrl.u32 %v76, 7
    %v78 = vsub.s32 0, %v77
    %v79 = vrot.slane %v46, %v78
    %v80 = vlaneseq
    %v81 = vshrl.u32 %v80, 7
    %v82 = vsub.s32 0, %v81
    %v83 = vrot.slane %v50, %v82
    %v84 = vlaneseq
    %v85 = vshrl.u32 %v84, 7
    %v86 = vsub.s32 0, %v85
    %v87 = vrot.slane %v54, %v86
    %vm88 = vcmp.eq.s32.totalorder %v56, %v75
    %vm89 = vcmp.eq.s32.totalorder %v56, %v79
    %vm90 = vcmp.eq.s32.totalorder %v56, %v83
    %vm91 = vcmp.eq.s32.totalorder %v56, %v87
    %vm92 = vcmp.eq.s32.totalorder %v57, %v75
    %vm93 = vcmp.eq.s32.totalorder %v57, %v79
    %vm94 = vcmp.eq.s32.totalorder %v57, %v83
    %vm95 = vcmp.eq.s32.totalorder %v57, %v87
    %vm96 = vcmp.eq.s32.totalorder %v58, %v75
    %vm97 = vcmp.eq.s32.totalorder %v58, %v79
    %vm98 = vcmp.eq.s32.totalorder %v58, %v83
    %vm99 = vcmp.eq.s32.totalorder %v58, %v87
    %vm100 = vcmp.eq.s32.totalorder %v59, %v75
    %vm101 = vcmp.eq.s32.totalorder %v59, %v79
    %vm102 = vcmp.eq.s32.totalorder %v59, %v83
    %vm103 = vcmp.eq.s32.totalorder %v59, %v87
    %vm104 = vcmp.eq.s32.totalorder %v60, %v75
    %vm105 = vcmp.eq.s32.totalorder %v60, %v79
    %vm106 = vcmp.eq.s32.totalorder %v60, %v83
    %vm107 = vcmp.eq.s32.totalorder %v60, %v87
    %vm108 = vcmp.eq.s32.totalorder %v61, %v75
    %vm109 = vcmp.eq.s32.totalorder %v61, %v79
    %vm110 = vcmp.eq.s32.totalorder %v61, %v83
    %vm111 = vcmp.eq.s32.totalorder %v61, %v87
    %vm112 = vcmp.eq.s32.totalorder %v62, %v75
    %vm113 = vcmp.eq.s32.totalorder %v62, %v79
    %vm114 = vcmp.eq.s32.totalorder %v62, %v83
    %vm115 = vcmp.eq.s32.totalorder %v62, %v87
    %vm116 = vcmp.eq.s32.totalorder %v63, %v75
    %vm117 = vcmp.eq.s32.totalorder %v63, %v79
    %vm118 = vcmp.eq.s32.totalorder %v63, %v83
    %vm119 = vcmp.eq.s32.totalorder %v63, %v87
    %vm120 = vcmp.eq.s32.totalorder %v64, %v75
    %vm121 = vcmp.eq.s32.totalorder %v64, %v79
    %vm122 = vcmp.eq.s32.totalorder %v64, %v83
    %vm123 = vcmp.eq.s32.totalorder %v64, %v87
    %vm124 = vcmp.eq.s32.totalorder %v65, %v75
    %vm125 = vcmp.eq.s32.totalorder %v65, %v79
    %vm126 = vcmp.eq.s32.totalorder %v65, %v83
    %vm127 = vcmp.eq.s32.totalorder %v65, %v87
    %vm128 = vcmp.eq.s32.totalorder %v66, %v75
    %vm129 = vcmp.eq.s32.totalorder %v66, %v79
    %vm130 = vcmp.eq.s32.totalorder %v66, %v83
    %vm131 = vcmp.eq.s32.totalorder %v66, %v87
    %vm132 = vcmp.eq.s32.totalorder %v67, %v75
    %vm133 = vcmp.eq.s32.totalorder %v67, %v79
    %vm134 = vcmp.eq.s32.totalorder %v67, %v83
    %vm135 = vcmp.eq.s32.totalorder %v67, %v87
    %vm136 = vcmp.eq.s32.totalorder %v68, %v75
    %vm137 = vcmp.eq.s32.totalorder %v68, %v79
    %vm138 = vcmp.eq.s32.totalorder %v68, %v83
    %vm139 = vcmp.eq.s32.totalorder %v68, %v87
    %vm140 = vcmp.eq.s32.totalorder %v69, %v75
    %vm141 = vcmp.eq.s32.totalorder %v69, %v79
    %vm142 = vcmp.eq.s32.totalorder %v69, %v83
    %vm143 = vcmp.eq.s32.totalorder %v69, %v87
    %vm144 = vcmp.eq.s32.totalorder %v70, %v75
    %vm145 = vcmp.eq.s32.totalorder %v70, %v79
    %vm146 = vcmp.eq.s32.totalorder %v70, %v83
    %vm147 = vcmp.eq.s32.totalorder %v70, %v87
    %vm148 = vcmp.eq.s32.totalorder %v71, %v75
    %vm149 = vcmp.eq.s32.totalorder %v71, %v79
    %vm150 = vcmp.eq.s32.totalorder %v71, %v83
    %vm151 = vcmp.eq.s32.totalorder %v71, %v87
    %v152 = vsel %vm88, 1, 0
    %v153 = vsel %vm89, 1, 0
    %v154 = vsel %vm90, 1, 0
    %v155 = vsel %vm91, 1, 0
    %v156 = vsel %vm92, 1, 0
    %v157 = vsel %vm93, 1, 0
    %v158 = vsel %vm94, 1, 0
    %v159 = vsel %vm95, 1, 0
    %v160 = vsel %vm96, 1, 0
    %v161 = vsel %vm97, 1, 0
    %v162 = vsel %vm98, 1, 0
    %v163 = vsel %vm99, 1, 0
    %v164 = vsel %vm100, 1, 0
    %v165 = vsel %vm101, 1, 0
    %v166 = vsel %vm102, 1, 0
    %v167 = vsel %vm103, 1, 0
    %v168 = vsel %vm104, 1, 0
    %v169 = vsel %vm105, 1, 0
    %v170 = vsel %vm106, 1, 0
    %v171 = vsel %vm107, 1, 0
    %v172 = vsel %vm108, 1, 0
    %v173 = vsel %vm109, 1, 0
    %v174 = vsel %vm110, 1, 0
    %v175 = vsel %vm111, 1, 0
    %v176 = vsel %vm112, 1, 0
    %v177 = vsel %vm113, 1, 0
    %v178 = vsel %vm114, 1, 0
    %v179 = vsel %vm115, 1, 0
    %v180 = vsel %vm116, 1, 0
    %v181 = vsel %vm117, 1, 0
    %v182 = vsel %vm118, 1, 0
    %v183 = vsel %vm119, 1, 0
    %v184 = vsel %vm120, 1, 0
    %v185 = vsel %vm121, 1, 0
    %v186 = vsel %vm122, 1, 0
    %v187 = vsel %vm123, 1, 0
    %v188 = vsel %vm124, 1, 0
    %v189 = vsel %vm125, 1, 0
    %v190 = vsel %vm126, 1, 0
    %v191 = vsel %vm127, 1, 0
    %v192 = vsel %vm128, 1, 0
    %v193 = vsel %vm129, 1, 0
    %v194 = vsel %vm130, 1, 0
    %v195 = vsel %vm131, 1, 0
    %v196 = vsel %vm132, 1, 0
    %v197 = vsel %vm133, 1, 0
    %v198 = vsel %vm134, 1, 0
    %v199 = vsel %vm135, 1, 0
    %v200 = vsel %vm136, 1, 0
    %v201 = vsel %vm137, 1, 0
    %v202 = vsel %vm138, 1, 0
    %v203 = vsel %vm139, 1, 0
    %v204 = vsel %vm140, 1, 0
    %v205 = vsel %vm141, 1, 0
    %v206 = vsel %vm142, 1, 0
    %v207 = vsel %vm143, 1, 0
    %v208 = vsel %vm144, 1, 0
    %v209 = vsel %vm145, 1, 0
    %v210 = vsel %vm146, 1, 0
    %v211 = vsel %vm147, 1, 0
    %v212 = vsel %vm148, 1, 0
    %v213 = vsel %vm149, 1, 0
    %v214 = vsel %vm150, 1, 0
    %v215 = vsel %vm151, 1, 0
    %v216 = vcvt.s32.f32 %v152
    %v217 = vcvt.s32.f32 %v153
    %v218 = vcvt.s32.f32 %v154
    %v219 = vcvt.s32.f32 %v155
    %v220 = vcvt.s32.f32 %v156
    %v221 = vcvt.s32.f32 %v157
    %v222 = vcvt.s32.f32 %v158
    %v223 = vcvt.s32.f32 %v159
    %v224 = vcvt.s32.f32 %v160
    %v225 = vcvt.s32.f32 %v161
    %v226 = vcvt.s32.f32 %v162
    %v227 = vcvt.s32.f32 %v163
    %v228 = vcvt.s32.f32 %v164
    %v229 = vcvt.s32.f32 %v165
    %v230 = vcvt.s32.f32 %v166
    %v231 = vcvt.s32.f32 %v167
    %v232 = vcvt.s32.f32 %v168
    %v233 = vcvt.s32.f32 %v169
    %v234 = vcvt.s32.f32 %v170
    %v235 = vcvt.s32.f32 %v171
    %v236 = vcvt.s32.f32 %v172
    %v237 = vcvt.s32.f32 %v173
    %v238 = vcvt.s32.f32 %v174
    %v239 = vcvt.s32.f32 %v175
    %v240 = vcvt.s32.f32 %v176
    %v241 = vcvt.s32.f32 %v177
    %v242 = vcvt.s32.f32 %v178
    %v243 = vcvt.s32.f32 %v179
    %v244 = vcvt.s32.f32 %v180
    %v245 = vcvt.s32.f32 %v181
    %v246 = vcvt.s32.f32 %v182
    %v247 = vcvt.s32.f32 %v183
    %v248 = vcvt.s32.f32 %v184
    %v249 = vcvt.s32.f32 %v185
    %v250 = vcvt.s32.f32 %v186
    %v251 = vcvt.s32.f32 %v187
    %v252 = vcvt.s32.f32 %v188
    %v253 = vcvt.s32.f32 %v189
    %v254 = vcvt.s32.f32 %v190
    %v255 = vcvt.s32.f32 %v191
    %v256 = vcvt.s32.f32 %v192
    %v257 = vcvt.s32.f32 %v193
    %v258 = vcvt.s32.f32 %v194
    %v259 = vcvt.s32.f32 %v195
    %v260 = vcvt.s32.f32 %v196
    %v261 = vcvt.s32.f32 %v197
    %v262 = vcvt.s32.f32 %v198
    %v263 = vcvt.s32.f32 %v199
    %v264 = vcvt.s32.f32 %v200
    %v265 = vcvt.s32.f32 %v201
    %v266 = vcvt.s32.f32 %v202
    %v267 = vcvt.s32.f32 %v203
    %v268 = vcvt.s32.f32 %v204
    %v269 = vcvt.s32.f32 %v205
    %v270 = vcvt.s32.f32 %v206
    %v271 = vcvt.s32.f32 %v207
    %v272 = vcvt.s32.f32 %v208
    %v273 = vcvt.s32.f32 %v209
    %v274 = vcvt.s32.f32 %v210
    %v275 = vcvt.s32.f32 %v211
    %v276 = vcvt.s32.f32 %v212
    %v277 = vcvt.s32.f32 %v213
    %v278 = vcvt.s32.f32 %v214
    %v279 = vcvt.s32.f32 %v215
    %v280 = vld [vmem:[#allocation5] sm:$0xff]
    %v281 = vld [vmem:[#allocation5 + $0x8] sm:$0xff]
    %v282 = vld [vmem:[#allocation5 + $0x10] sm:$0xff]
    %v283 = vld [vmem:[#allocation5 + $0x18] sm:$0xff]
    %284 = vmatprep.subr.mxu0 %v277
    %285 = vmatpush1.msra.mxu0 %v276
    %286 = vmatprep.subr.mxu0 %v273
    %287 = vmatpush1.msra.mxu0 %v272
    %288 = vmatprep.subr.mxu0 %v269
    %289 = vmatpush1.msra.mxu0 %v268
    %290 = vmatprep.subr.mxu0 %v265
    %291 = vmatpush1.msra.mxu0 %v264
    %292 = vmatprep.subr.mxu0 %v261
    %293 = vmatpush1.msra.mxu0 %v260
    %294 = vmatprep.subr.mxu0 %v257
    %295 = vmatpush1.msra.mxu0 %v256
    %296 = vmatprep.subr.mxu0 %v253
    %297 = vmatpush1.msra.mxu0 %v252
    %298 = vmatprep.subr.mxu0 %v249
    %299 = vmatpush1.msra.mxu0 %v248
    %300 = vmatprep.subr.mxu0 %v245
    %301 = vmatpush1.msra.mxu0 %v244
    %302 = vmatprep.subr.mxu0 %v241
    %303 = vmatpush1.msra.mxu0 %v240
    %304 = vmatprep.subr.mxu0 %v237
    %305 = vmatpush1.msra.mxu0 %v236
    %306 = vmatprep.subr.mxu0 %v233
    %307 = vmatpush1.msra.mxu0 %v232
    %308 = vmatprep.subr.mxu0 %v229
    %309 = vmatpush1.msra.mxu0 %v228
    %310 = vmatprep.subr.mxu0 %v225
    %311 = vmatpush1.msra.mxu0 %v224
    %312 = vmatprep.subr.mxu0 %v221
    %313 = vmatpush1.msra.mxu0 %v220
    %314 = vmatprep.subr.mxu0 %v217
    %315 = vmatpush1.msra.mxu0 %v216
    %316 = vmatprep.subr.mxu0 0.0
    %317 = vmatpush2.msra.mxu0 0.0
    %318 = vmatprep.subr.mxu0 0.0
    %319 = vmatpush2.msra.mxu0 0.0
    %320 = vmatprep.subr.mxu0 0.0
    %321 = vmatpush2.msra.mxu0 0.0
    %322 = vmatprep.subr.mxu0 0.0
    %323 = vmatpush2.msra.mxu0 0.0
    %324 = vmatprep.subr.mxu0 0.0
    %325 = vmatpush2.msra.mxu0 0.0
    %326 = vmatprep.subr.mxu0 0.0
    %327 = vmatpush2.msra.mxu0 0.0
    %328 = vmatprep.subr.mxu0 0.0
    %329 = vmatpush2.msra.mxu0 0.0
    %330 = vmatprep.subr.mxu0 0.0
    %331 = vmatpush2.msra.mxu0 0.0
    %332 = vmatprep.subr.mxu0 0.0
    %333 = vmatpush2.msra.mxu0 0.0
    %334 = vmatprep.subr.mxu0 0.0
    %335 = vmatpush2.msra.mxu0 0.0
    %336 = vmatprep.subr.mxu0 0.0
    %337 = vmatpush2.msra.mxu0 0.0
    %338 = vmatprep.subr.mxu0 0.0
    %339 = vmatpush2.msra.mxu0 0.0
    %340 = vmatprep.subr.mxu0 0.0
    %341 = vmatpush2.msra.mxu0 0.0
    %342 = vmatprep.subr.mxu0 0.0
    %343 = vmatpush2.msra.mxu0 0.0
    %344 = vmatprep.subr.mxu0 0.0
    %345 = vmatpush2.msra.mxu0 0.0
    %346 = vmatprep.subr.mxu0 0.0
    %347 = vmatpush2.msra.mxu0 0.0
    %348 = vmatprep.mubr.f32.mxu0 0.0
    %349 = vmatmul.mubr.f32.gmra.mxu0 %v280
    %v350 = vpop.f32.mrf.mxu0
    %v351 = vadd.f32 0.0, %v350
    %v352 = vpop.f32.mrf.mxu0
    %v353 = vadd.f32 0.0, %v352
    %354 = vmatprep.mubr.f32.mxu0 0.0
    %355 = vmatmul.mubr.f32.gmra.mxu0 %v281
    %v356 = vpop.f32.mrf.mxu0
    %v357 = vadd.f32 0.0, %v356
    %v358 = vpop.f32.mrf.mxu0
    %v359 = vadd.f32 0.0, %v358
    %360 = vmatprep.mubr.f32.mxu0 0.0
    %361 = vmatmul.mubr.f32.gmra.mxu0 %v282
    %v362 = vpop.f32.mrf.mxu0
    %v363 = vadd.f32 0.0, %v362
    %v364 = vpop.f32.mrf.mxu0
    %v365 = vadd.f32 0.0, %v364
    %366 = vmatprep.mubr.f32.mxu0 0.0
    %367 = vmatmul.mubr.f32.gmra.mxu0 %v283
    %v368 = vpop.f32.mrf.mxu0
    %v369 = vadd.f32 0.0, %v368
    %v370 = vpop.f32.mrf.mxu0
    %v371 = vadd.f32 0.0, %v370
    %372 = vdwg.mxu0
    %373 = vmatprep.subr.mxu0 %v279
    %374 = vmatpush1.msra.mxu0 %v278
    %375 = vmatprep.subr.mxu0 %v275
    %376 = vmatpush1.msra.mxu0 %v274
    %377 = vmatprep.subr.mxu0 %v271
    %378 = vmatpush1.msra.mxu0 %v270
    %379 = vmatprep.subr.mxu0 %v267
    %380 = vmatpush1.msra.mxu0 %v266
    %381 = vmatprep.subr.mxu0 %v263
    %382 = vmatpush1.msra.mxu0 %v262
    %383 = vmatprep.subr.mxu0 %v259
    %384 = vmatpush1.msra.mxu0 %v258
    %385 = vmatprep.subr.mxu0 %v255
    %386 = vmatpush1.msra.mxu0 %v254
    %387 = vmatprep.subr.mxu0 %v251
    %388 = vmatpush1.msra.mxu0 %v250
    %389 = vmatprep.subr.mxu0 %v247
    %390 = vmatpush1.msra.mxu0 %v246
    %391 = vmatprep.subr.mxu0 %v243
    %392 = vmatpush1.msra.mxu0 %v242
    %393 = vmatprep.subr.mxu0 %v239
    %394 = vmatpush1.msra.mxu0 %v238
    %395 = vmatprep.subr.mxu0 %v235
    %396 = vmatpush1.msra.mxu0 %v234
    %397 = vmatprep.subr.mxu0 %v231
    %398 = vmatpush1.msra.mxu0 %v230
    %399 = vmatprep.subr.mxu0 %v227
    %400 = vmatpush1.msra.mxu0 %v226
    %401 = vmatprep.subr.mxu0 %v223
    %402 = vmatpush1.msra.mxu0 %v222
    %403 = vmatprep.subr.mxu0 %v219
    %404 = vmatpush1.msra.mxu0 %v218
    %405 = vmatprep.subr.mxu0 0.0
    %406 = vmatpush2.msra.mxu0 0.0
    %407 = vmatprep.subr.mxu0 0.0
    %408 = vmatpush2.msra.mxu0 0.0
    %409 = vmatprep.subr.mxu0 0.0
    %410 = vmatpush2.msra.mxu0 0.0
    %411 = vmatprep.subr.mxu0 0.0
    %412 = vmatpush2.msra.mxu0 0.0
    %413 = vmatprep.subr.mxu0 0.0
    %414 = vmatpush2.msra.mxu0 0.0
    %415 = vmatprep.subr.mxu0 0.0
    %416 = vmatpush2.msra.mxu0 0.0
    %417 = vmatprep.subr.mxu0 0.0
    %418 = vmatpush2.msra.mxu0 0.0
    %419 = vmatprep.subr.mxu0 0.0
    %420 = vmatpush2.msra.mxu0 0.0
    %421 = vmatprep.subr.mxu0 0.0
    %422 = vmatpush2.msra.mxu0 0.0
    %423 = vmatprep.subr.mxu0 0.0
    %424 = vmatpush2.msra.mxu0 0.0
    %425 = vmatprep.subr.mxu0 0.0
    %426 = vmatpush2.msra.mxu0 0.0
    %427 = vmatprep.subr.mxu0 0.0
    %428 = vmatpush2.msra.mxu0 0.0
    %429 = vmatprep.subr.mxu0 0.0
    %430 = vmatpush2.msra.mxu0 0.0
    %431 = vmatprep.subr.mxu0 0.0
    %432 = vmatpush2.msra.mxu0 0.0
    %433 = vmatprep.subr.mxu0 0.0
    %434 = vmatpush2.msra.mxu0 0.0
    %435 = vmatprep.subr.mxu0 0.0
    %436 = vmatpush2.msra.mxu0 0.0
    %437 = vmatprep.mubr.f32.mxu0 0.0
    %438 = vmatmul.mubr.f32.gmra.mxu0 %v280
    %v439 = vpop.f32.mrf.mxu0
    %v440 = vadd.f32 0.0, %v439
    %v441 = vpop.f32.mrf.mxu0
    %v442 = vadd.f32 0.0, %v441
    %443 = vmatprep.mubr.f32.mxu0 0.0
    %444 = vmatmul.mubr.f32.gmra.mxu0 %v281
    %v445 = vpop.f32.mrf.mxu0
    %v446 = vadd.f32 0.0, %v445
    %v447 = vpop.f32.mrf.mxu0
    %v448 = vadd.f32 0.0, %v447
    %449 = vmatprep.mubr.f32.mxu0 0.0
    %450 = vmatmul.mubr.f32.gmra.mxu0 %v282
    %v451 = vpop.f32.mrf.mxu0
    %v452 = vadd.f32 0.0, %v451
    %v453 = vpop.f32.mrf.mxu0
    %v454 = vadd.f32 0.0, %v453
    %455 = vmatprep.mubr.f32.mxu0 0.0
    %456 = vmatmul.mubr.f32.gmra.mxu0 %v283
    %v457 = vpop.f32.mrf.mxu0
    %v458 = vadd.f32 0.0, %v457
    %v459 = vpop.f32.mrf.mxu0
    %v460 = vadd.f32 0.0, %v459
    %461 = vdwg.mxu0
    %v462 = vmul.f32 %v351, %v440
    %v463 = vmul.f32 %v353, %v442
    %v464 = vmul.f32 %v357, %v446
    %v465 = vmul.f32 %v359, %v448
    %v466 = vmul.f32 %v363, %v452
    %v467 = vmul.f32 %v365, %v454
    %v468 = vmul.f32 %v369, %v458
    %v469 = vmul.f32 %v371, %v460
    %v470 = vadd.f32 %v462, %v464
    %v471 = vadd.f32 %v470, %v466
    %v472 = vadd.f32 %v471, %v468
    %v473 = vrot.slane %v472, 4
    %v474 = vadd.f32 %v472, %v473
    %v475 = vrot.slane %v474, 2
    %v476 = vadd.f32 %v474, %v475
    %v477 = vrot.slane %v476, 1
    %v478 = vadd.f32 %v476, %v477
    %v479 = vadd.f32 %v463, %v465
    %v480 = vadd.f32 %v479, %v467
    %v481 = vadd.f32 %v480, %v469
    %v482 = vrot.slane %v481, 4
    %v483 = vadd.f32 %v481, %v482
    %v484 = vrot.slane %v483, 2
    %v485 = vadd.f32 %v483, %v484
    %v486 = vrot.slane %v485, 1
    %v487 = vadd.f32 %v485, %v486
    %v488 = vxor.u32 %v478, 2147483648
    %v489 = vxor.u32 %v487, 2147483648
    %v490 = vmul.f32 %v488, 1.442695
    %v491 = vpow.pop %v490
    %v492 = vmul.f32 %v489, 1.442695
    %v493 = vpow.pop %v492
    %v494 = vadd.f32 %v491, 1.0
    %v495 = vadd.f32 %v493, 1.0
    %v496 = vrcp.pop %v494
    %v497 = vmul.f32 1.0, %v496
    %v498 = vrcp.pop %v495
    %v499 = vmul.f32 1.0, %v498
    %v502 = vcombine.low %v497, %v499
    %v504 = vunpack.c.l.s4 1966171168
    %v505 = vunpack.c.0.s8 %v504
    %v506 = vlaneseq
    %v507 = vshrl.u32 %v506, 7
    %v508 = vsub.s32 %v505, %v507
    %v509 = vrot.slane %v502, %v508
    %v511 = vunpack.c.l.s4 1966171168
    %v512 = vunpack.c.0.s8 %v511
    %v513 = vlaneseq
    %v514 = vshrl.u32 %v513, 7
    %v515 = vsub.s32 %v512, %v514
    %v516 = vrot.slane %v509, %v515
    %v518 = vlaneseq
    %vm519 = vcmp.ge.s32.totalorder %v518, 0
    %vm520 = vcmp.lt.s32.totalorder %v518, 256
    %vm521 = vmand %vm519, %vm520
    %522 = vst.msk [vmem:[#allocation7] sm:$0x3] %vm521, %v516
    // Predicated region
    $region18: #{tpu_custom_call.1} parent=1 // pred_check
      _
    $region19: #{tpu_custom_call.1} parent=1 // pred_check_branch
      %524 = sbr.rel (0) target = $region21
    $region20: #{tpu_custom_call.1} parent=1 // pred_region
      %s526 = ssub.s32 32, 32
      %527 = vsyncadd [#allocation4], %s526
      %s529 = sshll.u32 [#allocation7], 4
      %s530 = int_to_ptr.vmem [resolvable:$true] %s529
      %532 = dma.vmem_to_hbm [thread:$0]  %s530, 32, %s2, [#allocation4]
    $region21: #{tpu_custom_call.1} parent=1 // pred_fallthru
      _
    // Predicated region
    $region22: #{tpu_custom_call.1} parent=1 // pred_check
      _
    $region23: #{tpu_custom_call.1} parent=1 // pred_check_branch
      %534 = sbr.rel (0) target = $region25
    $region24: #{tpu_custom_call.1} parent=1 // pred_region
      %535 = dma.done [#allocation4], 32
    $region25: #{tpu_custom_call.1} parent=1 // pred_fallthru
      _
    %536 = vsyncpa [#allocation3], 1
    %537 = vsyncpa [#allocation6], 1
    %538 = vsyncpa [#allocation4], 1

// kernel: tpu_custom_call.1
$region0: #{tpu_custom_call.1}
  #allocation0 [shape = 'u32[]', space=smem, size = 0x4, offset = 0x4, fixed_abs, tag = 'smem constant byte address 0x4 - core index']
  #allocation1 [shape = 'u32[144,128]{1,0:T(1,128)}', space=vmem, size = 0x12000, scoped, tag = 'internal scratch']
  %s0 = inlined_call_operand.hbm [shape: s32[2,256], index: 0, kind: input, shape index: {}]
  %s1 = inlined_call_operand.hbm [shape: f32[32,128], index: 1, kind: input, shape index: {}]
  %s2 = inlined_call_operand.hbm [shape: f32[1,256], index: 2, kind: output, shape index: {}]
  %s3 = sld [smem:[#allocation0]]
  $region26: #{tpu_custom_call.1} parent=0
    _
  %s5 = ssub.s32 1, %s3
  %s6 = scalar_select 0, %s5, %s3
  $region1: #{tpu_custom_call.1} parent=0
    #allocation2 [shape = 'u8[2048]{0}', space=vmem, size = 0x800, scoped, tag = 'input window, operand 0, single buffered']
    #allocation3 [shape = 's32[1]{0}', space=sflag, size = 0x4, scoped, tag = 'scoped memory for tpu_custom_call.1']
    #allocation4 [shape = 's32[1]{0}', space=sflag, size = 0x4, scoped, tag = 'scoped memory for tpu_custom_call.1']
    #allocation5 [shape = 'u8[16384]{0}', space=vmem, size = 0x4000, scoped, tag = 'input window, operand 1, single buffered']
    #allocation6 [shape = 's32[1]{0}', space=sflag, size = 0x4, scoped, tag = 'scoped memory for tpu_custom_call.1']
    #allocation7 [shape = 'u8[1024]{0}', space=vmem, size = 0x400, scoped, tag = 'output window, operand 0, single buffered']
    %7 = vsyncpa [#allocation3], 0
    %8 = vsyncpa [#allocation6], 0
    %9 = vsyncpa [#allocation4], 0
    // Predicated region
    $region2: #{tpu_custom_call.1} parent=1 // pred_check
      _
    $region3: #{tpu_custom_call.1} parent=1 // pred_check_branch
      %11 = sbr.rel (0) target = $region5
    $region4: #{tpu_custom_call.1} parent=1 // pred_region
      %s13 = ssub.s32 64, 64
      %14 = vsyncadd [#allocation3], %s13
      %s16 = sshll.u32 [#allocation2], 4
      %s17 = int_to_ptr.vmem [resolvable:$true] %s16
      %19 = dma.hbm_to_vmem [thread:$0]  %s0, 64, %s17, [#allocation3]
    $region5: #{tpu_custom_call.1} parent=1 // pred_fallthru
      _
    // Predicated region
    $region6: #{tpu_custom_call.1} parent=1 // pred_check
      _
    $region7: #{tpu_custom_call.1} parent=1 // pred_check_branch
      %21 = sbr.rel (0) target = $region9
    $region8: #{tpu_custom_call.1} parent=1 // pred_region
      %s23 = ssub.s32 512, 512
      %24 = vsyncadd [#allocation6], %s23
      %s25 = sshll.u32 [#allocation5], 4
      %s26 = int_to_ptr.vmem [resolvable:$true] %s25
      %31 = dma.hbm_to_vmem [thread:$0]  %s1, 512, %s26, [#allocation6], 128, 128, 8
    $region9: #{tpu_custom_call.1} parent=1 // pred_fallthru
      _
    // Predicated region
    $region10: #{tpu_custom_call.1} parent=1 // pred_check
      _
    $region11: #{tpu_custom_call.1} parent=1 // pred_check_branch
      %33 = sbr.rel (0) target = $region13
    $region12: #{tpu_custom_call.1} parent=1 // pred_region
      %34 = dma.done [#allocation3], 64
    $region13: #{tpu_custom_call.1} parent=1 // pred_fallthru
      _
    // Predicated region
    $region14: #{tpu_custom_call.1} parent=1 // pred_check
      _
    $region15: #{tpu_custom_call.1} parent=1 // pred_check_branch
      %36 = sbr.rel (0) target = $region17
    $region16: #{tpu_custom_call.1} parent=1 // pred_region
      %37 = dma.done [#allocation6], 512
    $region17: #{tpu_custom_call.1} parent=1 // pred_fallthru
      _
    %v38 = vld [vmem:[#allocation2] sm:$0xf]
    %v39 = vlaneseq
    %v40 = vshrl.u32 %v39, 7
    %v41 = vsub.s32 0, %v40
    %v42 = vrot.slane %v38, %v41
    %v43 = vlaneseq
    %v44 = vshrl.u32 %v43, 7
    %v45 = vsub.s32 2, %v44
    %v46 = vrot.slane %v38, %v45
    %v47 = vlaneseq
    %v48 = vshrl.u32 %v47, 7
    %v49 = vsub.s32 1, %v48
    %v50 = vrot.slane %v38, %v49
    %v51 = vlaneseq
    %v52 = vshrl.u32 %v51, 7
    %v53 = vsub.s32 3, %v52
    %v54 = vrot.slane %v38, %v53
    %v55 = vlaneseq
    %v56 = vshrl.u32 %v55, 7
    %v57 = vadd.s32 %v56, 8
    %v58 = vadd.s32 %v56, 16
    %v59 = vadd.s32 %v56, 24
    %v60 = vadd.s32 %v56, 32
    %v61 = vadd.s32 %v56, 40
    %v62 = vadd.s32 %v56, 48
    %v63 = vadd.s32 %v56, 56
    %v64 = vadd.s32 %v56, 64
    %v65 = vadd.s32 %v56, 72
    %v66 = vadd.s32 %v56, 80
    %v67 = vadd.s32 %v56, 88
    %v68 = vadd.s32 %v56, 96
    %v69 = vadd.s32 %v56, 104
    %v70 = vadd.s32 %v56, 112
    %v71 = vadd.s32 %v56, 120
    %v72 = vlaneseq
    %v73 = vshrl.u32 %v72, 7
    %v74 = vsub.s32 0, %v73
    %v75 = vrot.slane %v42, %v74
    %v76 = vlaneseq
    %v77 = vshrl.u32 %v76, 7
    %v78 = vsub.s32 0, %v77
    %v79 = vrot.slane %v46, %v78
    %v80 = vlaneseq
    %v81 = vshrl.u32 %v80, 7
    %v82 = vsub.s32 0, %v81
    %v83 = vrot.slane %v50, %v82
    %v84 = vlaneseq
    %v85 = vshrl.u32 %v84, 7
    %v86 = vsub.s32 0, %v85
    %v87 = vrot.slane %v54, %v86
    %vm88 = vcmp.eq.s32.totalorder %v56, %v75
    %vm89 = vcmp.eq.s32.totalorder %v56, %v79
    %vm90 = vcmp.eq.s32.totalorder %v56, %v83
    %vm91 = vcmp.eq.s32.totalorder %v56, %v87
    %vm92 = vcmp.eq.s32.totalorder %v57, %v75
    %vm93 = vcmp.eq.s32.totalorder %v57, %v79
    %vm94 = vcmp.eq.s32.totalorder %v57, %v83
    %vm95 = vcmp.eq.s32.totalorder %v57, %v87
    %vm96 = vcmp.eq.s32.totalorder %v58, %v75
    %vm97 = vcmp.eq.s32.totalorder %v58, %v79
    %vm98 = vcmp.eq.s32.totalorder %v58, %v83
    %vm99 = vcmp.eq.s32.totalorder %v58, %v87
    %vm100 = vcmp.eq.s32.totalorder %v59, %v75
    %vm101 = vcmp.eq.s32.totalorder %v59, %v79
    %vm102 = vcmp.eq.s32.totalorder %v59, %v83
    %vm103 = vcmp.eq.s32.totalorder %v59, %v87
    %vm104 = vcmp.eq.s32.totalorder %v60, %v75
    %vm105 = vcmp.eq.s32.totalorder %v60, %v79
    %vm106 = vcmp.eq.s32.totalorder %v60, %v83
    %vm107 = vcmp.eq.s32.totalorder %v60, %v87
    %vm108 = vcmp.eq.s32.totalorder %v61, %v75
    %vm109 = vcmp.eq.s32.totalorder %v61, %v79
    %vm110 = vcmp.eq.s32.totalorder %v61, %v83
    %vm111 = vcmp.eq.s32.totalorder %v61, %v87
    %vm112 = vcmp.eq.s32.totalorder %v62, %v75
    %vm113 = vcmp.eq.s32.totalorder %v62, %v79
    %vm114 = vcmp.eq.s32.totalorder %v62, %v83
    %vm115 = vcmp.eq.s32.totalorder %v62, %v87
    %vm116 = vcmp.eq.s32.totalorder %v63, %v75
    %vm117 = vcmp.eq.s32.totalorder %v63, %v79
    %vm118 = vcmp.eq.s32.totalorder %v63, %v83
    %vm119 = vcmp.eq.s32.totalorder %v63, %v87
    %vm120 = vcmp.eq.s32.totalorder %v64, %v75
    %vm121 = vcmp.eq.s32.totalorder %v64, %v79
    %vm122 = vcmp.eq.s32.totalorder %v64, %v83
    %vm123 = vcmp.eq.s32.totalorder %v64, %v87
    %vm124 = vcmp.eq.s32.totalorder %v65, %v75
    %vm125 = vcmp.eq.s32.totalorder %v65, %v79
    %vm126 = vcmp.eq.s32.totalorder %v65, %v83
    %vm127 = vcmp.eq.s32.totalorder %v65, %v87
    %vm128 = vcmp.eq.s32.totalorder %v66, %v75
    %vm129 = vcmp.eq.s32.totalorder %v66, %v79
    %vm130 = vcmp.eq.s32.totalorder %v66, %v83
    %vm131 = vcmp.eq.s32.totalorder %v66, %v87
    %vm132 = vcmp.eq.s32.totalorder %v67, %v75
    %vm133 = vcmp.eq.s32.totalorder %v67, %v79
    %vm134 = vcmp.eq.s32.totalorder %v67, %v83
    %vm135 = vcmp.eq.s32.totalorder %v67, %v87
    %vm136 = vcmp.eq.s32.totalorder %v68, %v75
    %vm137 = vcmp.eq.s32.totalorder %v68, %v79
    %vm138 = vcmp.eq.s32.totalorder %v68, %v83
    %vm139 = vcmp.eq.s32.totalorder %v68, %v87
    %vm140 = vcmp.eq.s32.totalorder %v69, %v75
    %vm141 = vcmp.eq.s32.totalorder %v69, %v79
    %vm142 = vcmp.eq.s32.totalorder %v69, %v83
    %vm143 = vcmp.eq.s32.totalorder %v69, %v87
    %vm144 = vcmp.eq.s32.totalorder %v70, %v75
    %vm145 = vcmp.eq.s32.totalorder %v70, %v79
    %vm146 = vcmp.eq.s32.totalorder %v70, %v83
    %vm147 = vcmp.eq.s32.totalorder %v70, %v87
    %vm148 = vcmp.eq.s32.totalorder %v71, %v75
    %vm149 = vcmp.eq.s32.totalorder %v71, %v79
    %vm150 = vcmp.eq.s32.totalorder %v71, %v83
    %vm151 = vcmp.eq.s32.totalorder %v71, %v87
    %v152 = vsel %vm88, 1, 0
    %v153 = vsel %vm89, 1, 0
    %v154 = vsel %vm90, 1, 0
    %v155 = vsel %vm91, 1, 0
    %v156 = vsel %vm92, 1, 0
    %v157 = vsel %vm93, 1, 0
    %v158 = vsel %vm94, 1, 0
    %v159 = vsel %vm95, 1, 0
    %v160 = vsel %vm96, 1, 0
    %v161 = vsel %vm97, 1, 0
    %v162 = vsel %vm98, 1, 0
    %v163 = vsel %vm99, 1, 0
    %v164 = vsel %vm100, 1, 0
    %v165 = vsel %vm101, 1, 0
    %v166 = vsel %vm102, 1, 0
    %v167 = vsel %vm103, 1, 0
    %v168 = vsel %vm104, 1, 0
    %v169 = vsel %vm105, 1, 0
    %v170 = vsel %vm106, 1, 0
    %v171 = vsel %vm107, 1, 0
    %v172 = vsel %vm108, 1, 0
    %v173 = vsel %vm109, 1, 0
    %v174 = vsel %vm110, 1, 0
    %v175 = vsel %vm111, 1, 0
    %v176 = vsel %vm112, 1, 0
    %v177 = vsel %vm113, 1, 0
    %v178 = vsel %vm114, 1, 0
    %v179 = vsel %vm115, 1, 0
    %v180 = vsel %vm116, 1, 0
    %v181 = vsel %vm117, 1, 0
    %v182 = vsel %vm118, 1, 0
    %v183 = vsel %vm119, 1, 0
    %v184 = vsel %vm120, 1, 0
    %v185 = vsel %vm121, 1, 0
    %v186 = vsel %vm122, 1, 0
    %v187 = vsel %vm123, 1, 0
    %v188 = vsel %vm124, 1, 0
    %v189 = vsel %vm125, 1, 0
    %v190 = vsel %vm126, 1, 0
    %v191 = vsel %vm127, 1, 0
    %v192 = vsel %vm128, 1, 0
    %v193 = vsel %vm129, 1, 0
    %v194 = vsel %vm130, 1, 0
    %v195 = vsel %vm131, 1, 0
    %v196 = vsel %vm132, 1, 0
    %v197 = vsel %vm133, 1, 0
    %v198 = vsel %vm134, 1, 0
    %v199 = vsel %vm135, 1, 0
    %v200 = vsel %vm136, 1, 0
    %v201 = vsel %vm137, 1, 0
    %v202 = vsel %vm138, 1, 0
    %v203 = vsel %vm139, 1, 0
    %v204 = vsel %vm140, 1, 0
    %v205 = vsel %vm141, 1, 0
    %v206 = vsel %vm142, 1, 0
    %v207 = vsel %vm143, 1, 0
    %v208 = vsel %vm144, 1, 0
    %v209 = vsel %vm145, 1, 0
    %v210 = vsel %vm146, 1, 0
    %v211 = vsel %vm147, 1, 0
    %v212 = vsel %vm148, 1, 0
    %v213 = vsel %vm149, 1, 0
    %v214 = vsel %vm150, 1, 0
    %v215 = vsel %vm151, 1, 0
    %v216 = vcvt.s32.f32 %v152
    %v217 = vcvt.s32.f32 %v153
    %v218 = vcvt.s32.f32 %v154
    %v219 = vcvt.s32.f32 %v155
    %v220 = vcvt.s32.f32 %v156
    %v221 = vcvt.s32.f32 %v157
    %v222 = vcvt.s32.f32 %v158
    %v223 = vcvt.s32.f32 %v159
    %v224 = vcvt.s32.f32 %v160
    %v225 = vcvt.s32.f32 %v161
    %v226 = vcvt.s32.f32 %v162
    %v227 = vcvt.s32.f32 %v163
    %v228 = vcvt.s32.f32 %v164
    %v229 = vcvt.s32.f32 %v165
    %v230 = vcvt.s32.f32 %v166
    %v231 = vcvt.s32.f32 %v167
    %v232 = vcvt.s32.f32 %v168
    %v233 = vcvt.s32.f32 %v169
    %v234 = vcvt.s32.f32 %v170
    %v235 = vcvt.s32.f32 %v171
    %v236 = vcvt.s32.f32 %v172
    %v237 = vcvt.s32.f32 %v173
    %v238 = vcvt.s32.f32 %v174
    %v239 = vcvt.s32.f32 %v175
    %v240 = vcvt.s32.f32 %v176
    %v241 = vcvt.s32.f32 %v177
    %v242 = vcvt.s32.f32 %v178
    %v243 = vcvt.s32.f32 %v179
    %v244 = vcvt.s32.f32 %v180
    %v245 = vcvt.s32.f32 %v181
    %v246 = vcvt.s32.f32 %v182
    %v247 = vcvt.s32.f32 %v183
    %v248 = vcvt.s32.f32 %v184
    %v249 = vcvt.s32.f32 %v185
    %v250 = vcvt.s32.f32 %v186
    %v251 = vcvt.s32.f32 %v187
    %v252 = vcvt.s32.f32 %v188
    %v253 = vcvt.s32.f32 %v189
    %v254 = vcvt.s32.f32 %v190
    %v255 = vcvt.s32.f32 %v191
    %v256 = vcvt.s32.f32 %v192
    %v257 = vcvt.s32.f32 %v193
    %v258 = vcvt.s32.f32 %v194
    %v259 = vcvt.s32.f32 %v195
    %v260 = vcvt.s32.f32 %v196
    %v261 = vcvt.s32.f32 %v197
    %v262 = vcvt.s32.f32 %v198
    %v263 = vcvt.s32.f32 %v199
    %v264 = vcvt.s32.f32 %v200
    %v265 = vcvt.s32.f32 %v201
    %v266 = vcvt.s32.f32 %v202
    %v267 = vcvt.s32.f32 %v203
    %v268 = vcvt.s32.f32 %v204
    %v269 = vcvt.s32.f32 %v205
    %v270 = vcvt.s32.f32 %v206
    %v271 = vcvt.s32.f32 %v207
    %v272 = vcvt.s32.f32 %v208
    %v273 = vcvt.s32.f32 %v209
    %v274 = vcvt.s32.f32 %v210
    %v275 = vcvt.s32.f32 %v211
    %v276 = vcvt.s32.f32 %v212
    %v277 = vcvt.s32.f32 %v213
    %v278 = vcvt.s32.f32 %v214
    %v279 = vcvt.s32.f32 %v215
    %v280 = vld [vmem:[#allocation5] sm:$0xff]
    %v281 = vld [vmem:[#allocation5 + $0x8] sm:$0xff]
    %v282 = vld [vmem:[#allocation5 + $0x10] sm:$0xff]
    %v283 = vld [vmem:[#allocation5 + $0x18] sm:$0xff]
    %284 = vmatprep.subr.mxu0 %v277
    %285 = vmatpush1.msra.mxu0 %v276
    %286 = vmatprep.subr.mxu0 %v273
    %287 = vmatpush1.msra.mxu0 %v272
    %288 = vmatprep.subr.mxu0 %v269
    %289 = vmatpush1.msra.mxu0 %v268
    %290 = vmatprep.subr.mxu0 %v265
    %291 = vmatpush1.msra.mxu0 %v264
    %292 = vmatprep.subr.mxu0 %v261
    %293 = vmatpush1.msra.mxu0 %v260
    %294 = vmatprep.subr.mxu0 %v257
    %295 = vmatpush1.msra.mxu0 %v256
    %296 = vmatprep.subr.mxu0 %v253
    %297 = vmatpush1.msra.mxu0 %v252
    %298 = vmatprep.subr.mxu0 %v249
    %299 = vmatpush1.msra.mxu0 %v248
    %300 = vmatprep.subr.mxu0 %v245
    %301 = vmatpush1.msra.mxu0 %v244
    %302 = vmatprep.subr.mxu0 %v241
    %303 = vmatpush1.msra.mxu0 %v240
    %304 = vmatprep.subr.mxu0 %v237
    %305 = vmatpush1.msra.mxu0 %v236
    %306 = vmatprep.subr.mxu0 %v233
    %307 = vmatpush1.msra.mxu0 %v232
    %308 = vmatprep.subr.mxu0 %v229
    %309 = vmatpush1.msra.mxu0 %v228
    %310 = vmatprep.subr.mxu0 %v225
    %311 = vmatpush1.msra.mxu0 %v224
    %312 = vmatprep.subr.mxu0 %v221
    %313 = vmatpush1.msra.mxu0 %v220
    %314 = vmatprep.subr.mxu0 %v217
    %315 = vmatpush1.msra.mxu0 %v216
    %316 = vmatprep.subr.mxu0 0.0
    %317 = vmatpush2.msra.mxu0 0.0
    %318 = vmatprep.subr.mxu0 0.0
    %319 = vmatpush2.msra.mxu0 0.0
    %320 = vmatprep.subr.mxu0 0.0
    %321 = vmatpush2.msra.mxu0 0.0
    %322 = vmatprep.subr.mxu0 0.0
    %323 = vmatpush2.msra.mxu0 0.0
    %324 = vmatprep.subr.mxu0 0.0
    %325 = vmatpush2.msra.mxu0 0.0
    %326 = vmatprep.subr.mxu0 0.0
    %327 = vmatpush2.msra.mxu0 0.0
    %328 = vmatprep.subr.mxu0 0.0
    %329 = vmatpush2.msra.mxu0 0.0
    %330 = vmatprep.subr.mxu0 0.0
    %331 = vmatpush2.msra.mxu0 0.0
    %332 = vmatprep.subr.mxu0 0.0
    %333 = vmatpush2.msra.mxu0 0.0
    %334 = vmatprep.subr.mxu0 0.0
    %335 = vmatpush2.msra.mxu0 0.0
    %336 = vmatprep.subr.mxu0 0.0
    %337 = vmatpush2.msra.mxu0 0.0
    %338 = vmatprep.subr.mxu0 0.0
    %339 = vmatpush2.msra.mxu0 0.0
    %340 = vmatprep.subr.mxu0 0.0
    %341 = vmatpush2.msra.mxu0 0.0
    %342 = vmatprep.subr.mxu0 0.0
    %343 = vmatpush2.msra.mxu0 0.0
    %344 = vmatprep.subr.mxu0 0.0
    %345 = vmatpush2.msra.mxu0 0.0
    %346 = vmatprep.subr.mxu0 0.0
    %347 = vmatpush2.msra.mxu0 0.0
    %348 = vmatprep.mubr.f32.mxu0 0.0
    %349 = vmatmul.mubr.f32.gmra.mxu0 %v280
    %v350 = vpop.f32.mrf.mxu0
    %v351 = vadd.f32 0.0, %v350
    %v352 = vpop.f32.mrf.mxu0
    %v353 = vadd.f32 0.0, %v352
    %354 = vmatprep.mubr.f32.mxu0 0.0
    %355 = vmatmul.mubr.f32.gmra.mxu0 %v281
    %v356 = vpop.f32.mrf.mxu0
    %v357 = vadd.f32 0.0, %v356
    %v358 = vpop.f32.mrf.mxu0
    %v359 = vadd.f32 0.0, %v358
    %360 = vmatprep.mubr.f32.mxu0 0.0
    %361 = vmatmul.mubr.f32.gmra.mxu0 %v282
    %v362 = vpop.f32.mrf.mxu0
    %v363 = vadd.f32 0.0, %v362
    %v364 = vpop.f32.mrf.mxu0
    %v365 = vadd.f32 0.0, %v364
    %366 = vmatprep.mubr.f32.mxu0 0.0
    %367 = vmatmul.mubr.f32.gmra.mxu0 %v283
    %v368 = vpop.f32.mrf.mxu0
    %v369 = vadd.f32 0.0, %v368
    %v370 = vpop.f32.mrf.mxu0
    %v371 = vadd.f32 0.0, %v370
    %372 = vdwg.mxu0
    %373 = vmatprep.subr.mxu0 %v279
    %374 = vmatpush1.msra.mxu0 %v278
    %375 = vmatprep.subr.mxu0 %v275
    %376 = vmatpush1.msra.mxu0 %v274
    %377 = vmatprep.subr.mxu0 %v271
    %378 = vmatpush1.msra.mxu0 %v270
    %379 = vmatprep.subr.mxu0 %v267
    %380 = vmatpush1.msra.mxu0 %v266
    %381 = vmatprep.subr.mxu0 %v263
    %382 = vmatpush1.msra.mxu0 %v262
    %383 = vmatprep.subr.mxu0 %v259
    %384 = vmatpush1.msra.mxu0 %v258
    %385 = vmatprep.subr.mxu0 %v255
    %386 = vmatpush1.msra.mxu0 %v254
    %387 = vmatprep.subr.mxu0 %v251
    %388 = vmatpush1.msra.mxu0 %v250
    %389 = vmatprep.subr.mxu0 %v247
    %390 = vmatpush1.msra.mxu0 %v246
    %391 = vmatprep.subr.mxu0 %v243
    %392 = vmatpush1.msra.mxu0 %v242
    %393 = vmatprep.subr.mxu0 %v239
    %394 = vmatpush1.msra.mxu0 %v238
    %395 = vmatprep.subr.mxu0 %v235
    %396 = vmatpush1.msra.mxu0 %v234
    %397 = vmatprep.subr.mxu0 %v231
    %398 = vmatpush1.msra.mxu0 %v230
    %399 = vmatprep.subr.mxu0 %v227
    %400 = vmatpush1.msra.mxu0 %v226
    %401 = vmatprep.subr.mxu0 %v223
    %402 = vmatpush1.msra.mxu0 %v222
    %403 = vmatprep.subr.mxu0 %v219
    %404 = vmatpush1.msra.mxu0 %v218
    %405 = vmatprep.subr.mxu0 0.0
    %406 = vmatpush2.msra.mxu0 0.0
    %407 = vmatprep.subr.mxu0 0.0
    %408 = vmatpush2.msra.mxu0 0.0
    %409 = vmatprep.subr.mxu0 0.0
    %410 = vmatpush2.msra.mxu0 0.0
    %411 = vmatprep.subr.mxu0 0.0
    %412 = vmatpush2.msra.mxu0 0.0
    %413 = vmatprep.subr.mxu0 0.0
    %414 = vmatpush2.msra.mxu0 0.0
    %415 = vmatprep.subr.mxu0 0.0
    %416 = vmatpush2.msra.mxu0 0.0
    %417 = vmatprep.subr.mxu0 0.0
    %418 = vmatpush2.msra.mxu0 0.0
    %419 = vmatprep.subr.mxu0 0.0
    %420 = vmatpush2.msra.mxu0 0.0
    %421 = vmatprep.subr.mxu0 0.0
    %422 = vmatpush2.msra.mxu0 0.0
    %423 = vmatprep.subr.mxu0 0.0
    %424 = vmatpush2.msra.mxu0 0.0
    %425 = vmatprep.subr.mxu0 0.0
    %426 = vmatpush2.msra.mxu0 0.0
    %427 = vmatprep.subr.mxu0 0.0
    %428 = vmatpush2.msra.mxu0 0.0
    %429 = vmatprep.subr.mxu0 0.0
    %430 = vmatpush2.msra.mxu0 0.0
    %431 = vmatprep.subr.mxu0 0.0
    %432 = vmatpush2.msra.mxu0 0.0
    %433 = vmatprep.subr.mxu0 0.0
    %434 = vmatpush2.msra.mxu0 0.0
    %435 = vmatprep.subr.mxu0 0.0
    %436 = vmatpush2.msra.mxu0 0.0
    %437 = vmatprep.mubr.f32.mxu0 0.0
    %438 = vmatmul.mubr.f32.gmra.mxu0 %v280
    %v439 = vpop.f32.mrf.mxu0
    %v440 = vadd.f32 0.0, %v439
    %v441 = vpop.f32.mrf.mxu0
    %v442 = vadd.f32 0.0, %v441
    %443 = vmatprep.mubr.f32.mxu0 0.0
    %444 = vmatmul.mubr.f32.gmra.mxu0 %v281
    %v445 = vpop.f32.mrf.mxu0
    %v446 = vadd.f32 0.0, %v445
    %v447 = vpop.f32.mrf.mxu0
    %v448 = vadd.f32 0.0, %v447
    %449 = vmatprep.mubr.f32.mxu0 0.0
    %450 = vmatmul.mubr.f32.gmra.mxu0 %v282
    %v451 = vpop.f32.mrf.mxu0
    %v452 = vadd.f32 0.0, %v451
    %v453 = vpop.f32.mrf.mxu0
    %v454 = vadd.f32 0.0, %v453
    %455 = vmatprep.mubr.f32.mxu0 0.0
    %456 = vmatmul.mubr.f32.gmra.mxu0 %v283
    %v457 = vpop.f32.mrf.mxu0
    %v458 = vadd.f32 0.0, %v457
    %v459 = vpop.f32.mrf.mxu0
    %v460 = vadd.f32 0.0, %v459
    %461 = vdwg.mxu0
    %v462 = vmul.f32 %v351, %v440
    %v463 = vmul.f32 %v353, %v442
    %v464 = vmul.f32 %v357, %v446
    %v465 = vmul.f32 %v359, %v448
    %v466 = vmul.f32 %v363, %v452
    %v467 = vmul.f32 %v365, %v454
    %v468 = vmul.f32 %v369, %v458
    %v469 = vmul.f32 %v371, %v460
    %v470 = vadd.f32 %v462, %v464
    %v471 = vadd.f32 %v470, %v466
    %v472 = vadd.f32 %v471, %v468
    %v473 = vrot.slane %v472, 4
    %v474 = vadd.f32 %v472, %v473
    %v475 = vrot.slane %v474, 2
    %v476 = vadd.f32 %v474, %v475
    %v477 = vrot.slane %v476, 1
    %v478 = vadd.f32 %v476, %v477
    %v479 = vadd.f32 %v463, %v465
    %v480 = vadd.f32 %v479, %v467
    %v481 = vadd.f32 %v480, %v469
    %v482 = vrot.slane %v481, 4
    %v483 = vadd.f32 %v481, %v482
    %v484 = vrot.slane %v483, 2
    %v485 = vadd.f32 %v483, %v484
    %v486 = vrot.slane %v485, 1
    %v487 = vadd.f32 %v485, %v486
    %v488 = vxor.u32 %v478, 2147483648
    %v489 = vxor.u32 %v487, 2147483648
    %v490 = vmul.f32 %v488, 1.442695
    %v491 = vpow.pop %v490
    %v492 = vmul.f32 %v489, 1.442695
    %v493 = vpow.pop %v492
    %v494 = vadd.f32 %v491, 1.0
    %v495 = vadd.f32 %v493, 1.0
    %v496 = vrcp.pop %v494
    %v497 = vmul.f32 1.0, %v496
    %v498 = vrcp.pop %v495
    %v499 = vmul.f32 1.0, %v498
    %v502 = vcombine.low %v497, %v499
    %v504 = vunpack.c.l.s4 1966171168
    %v505 = vunpack.c.0.s8 %v504
    %v506 = vlaneseq
    %v507 = vshrl.u32 %v506, 7
    %v508 = vsub.s32 %v505, %v507
    %v509 = vrot.slane %v502, %v508
    %v511 = vunpack.c.l.s4 1966171168
    %v512 = vunpack.c.0.s8 %v511
    %v513 = vlaneseq
    %v514 = vshrl.u32 %v513, 7
    %v515 = vsub.s32 %v512, %v514
    %v516 = vrot.slane %v509, %v515
    %v518 = vlaneseq
    %vm519 = vcmp.ge.s32.totalorder %v518, 0
    %vm520 = vcmp.lt.s32.totalorder %v518, 256
    %vm521 = vmand %vm519, %vm520
    %522 = vst.msk [vmem:[#allocation7] sm:$0x3] %vm521, %v516
    // Predicated region
    $region18: #{tpu_custom_call.1} parent=1 // pred_check
      _
    $region19: #{tpu_custom_call.1} parent=1 // pred_check_branch
      %524 = sbr.rel (0) target = $region21
    $region20: #{tpu_custom_call.1} parent=1 // pred_region
      %s526 = ssub.s32 32, 32
      %527 = vsyncadd [#allocation4], %s526
      %s529 = sshll.u32 [#allocation7], 4
      %s530 = int_to_ptr.vmem [resolvable:$true] %s529
      %532 = dma.vmem_to_hbm [thread:$0]  %s530, 32, %s2, [#allocation4]
    $region21: #{tpu_custom_call.1} parent=1 // pred_fallthru
      _
    // Predicated region
    $region22: #{tpu_custom_call.1} parent=1 // pred_check
      _
    $region23: #{tpu_custom_call.1} parent=1 // pred_check_branch
      %534 = sbr.rel (0) target = $region25
    $region24: #{tpu_custom_call.1} parent=1 // pred_region
      %535 = dma.done [#allocation4], 32
    $region25: #{tpu_custom_call.1} parent=1 // pred_fallthru
      _
    %536 = vsyncpa [#allocation3], 1
    %537 = vsyncpa [#allocation6], 1
    %538 = vsyncpa [#allocation4], 1

</llo_original>
